<compile_context>
chip_gen: v5e
topology: v5e:2x2
jax: 0.10.0
libtpu: 0.0.40
codegen_flags: <defaults>
</compile_context>

<pallas_src>
import functools

import jax
import jax.numpy as jnp
from jax.experimental import pallas as pl
from jax.experimental.pallas import tpu as pltpu


def _round_up(x, m):
    return ((x + m - 1) // m) * m


def _cdiv(a, b):
    return (a + b - 1) // b


# ----------------------------------------------------------------------------
# Fused MLP kernel: every layer in one body; activations never leave VMEM.
# ----------------------------------------------------------------------------
def _mlp_kernel(x_ref, *refs, num_hidden, value_size):
    # refs = (w0, b0, ..., w_{H-1}, b_{H-1}, w_out, b_out, o_ref)
    o_ref = refs[-1]
    h = x_ref[...]                                       # (TB, state_size)
    for i in range(num_hidden):
        w_ref = refs[2 * i]                              # (Kin, Kout_pad)
        b_ref = refs[2 * i + 1]                          # (1, Kout_pad) f32
        h = jnp.dot(h.astype(w_ref.dtype), w_ref[...],
                    preferred_element_type=jnp.float32) + b_ref[...]
        h = jnp.maximum(h, 0.0)                          # ReLU (hidden layers)

    w_ref = refs[2 * num_hidden]
    b_ref = refs[2 * num_hidden + 1]
    if value_size == 1:
        # Lane-packed value head: VPU multiply + cross-lane reduce (XLU).
        # Avoids a (TB,128)@(128,128) matmul with 127/128 wasted columns and a
        # 128x-amplified HBM write.  w_ref is the transposed weight row (1, K).
        v = jnp.sum(h * w_ref[...].astype(jnp.float32), axis=-1, keepdims=True)
        v = v + b_ref[...]                               # (TB, 1) + (1, 1)
    else:
        v = jnp.dot(h.astype(w_ref.dtype), w_ref[...],
                    preferred_element_type=jnp.float32) + b_ref[...]
    o_ref[...] = v.astype(o_ref.dtype)


# ----------------------------------------------------------------------------
# One-time parameter padding (hoisted out of the jitted forward path).
# ----------------------------------------------------------------------------
def pad_params(params, *, dtype=jnp.float32):
    """params: list of (w_t (din, dout), b (dout,)).  Last entry = value head.

    Hidden-layer weights are zero-padded to lane-dense (·, 128k) shapes; the
    first layer keeps K = state_size unpadded (full-dim block is legal), and
    the value head (value_size == 1) is stored as a transposed row (1, K_pad).
    Zero padding is exact (padded contributions are 0, ReLU(0) = 0).
    Use dtype=jnp.bfloat16 on v6e/v7x to halve HBM read bytes (f32 accumulate).
    """
    num_layers = len(params)
    state_size = int(params[0][0].shape[0])

    hidden = []
    for i, (w, b) in enumerate(params[:-1]):
        din, dout = w.shape
        dip = din if i == 0 else _round_up(din, 128)
        dop = _round_up(dout, 128)
        w_p = jnp.zeros((dip, dop), dtype).at[:din, :dout].set(w.astype(dtype))
        b_p = jnp.zeros((1, dop), jnp.float32).at[0, :dout].set(
            b.reshape(-1).astype(jnp.float32))
        hidden.append((w_p, b_p))

    w_last, b_last = params[-1]
    din, value_size = w_last.shape
    dip = din if num_layers == 1 else _round_up(din, 128)
    if value_size == 1:
        out_w = jnp.zeros((1, dip), dtype).at[0, :din].set(
            w_last[:, 0].astype(dtype))
        out_b = jnp.asarray(b_last, jnp.float32).reshape(1, 1)
    else:
        out_w = jnp.zeros((dip, value_size), dtype).at[:din, :].set(
            w_last.astype(dtype))
        out_b = jnp.asarray(b_last, jnp.float32).reshape(1, value_size)

    return {"hidden": hidden, "out_w": out_w, "out_b": out_b,
            "value_size": int(value_size), "state_size": state_size}


# ----------------------------------------------------------------------------
# Wrapper: batch-tiled grid, single pallas_call, weights VMEM-resident.
# ----------------------------------------------------------------------------
def critic_ppo_forward(state, padded, *, tb_max=2048):
    """state: (B, state_size); padded: output of pad_params()."""
    B, state_size = state.shape
    assert state_size == padded["state_size"]
    hidden = padded["hidden"]
    out_w, out_b = padded["out_w"], padded["out_b"]
    value_size = padded["value_size"]
    num_hidden = len(hidden)

    # Batch tiling: large tiles to amortize per-step overhead; keep >=2 grid
    # steps when B >= 16 (v7x megacore); never pad the batch by more than one
    # tile (TB derived from ceil(B / n_tiles), rounded up to the sublane 8).
    n_tiles = max(_cdiv(B, tb_max), 2 if B >= 16 else 1)
    TB = _round_up(_cdiv(B, n_tiles), 8)
    B_pad = _round_up(B, TB)
    n_tiles = B_pad // TB

    # No lane padding of the input; only pad batch rows when needed.
    if B_pad == B:
        x = state
    else:
        x = jnp.zeros((B_pad, state_size), state.dtype).at[:B].set(state)

    # x / out tiled over the batch; weights & biases resident (index (0, 0)).
    wb_args = []
    in_specs = [pl.BlockSpec((TB, state_size), lambda i: (i, 0))]
    for (w_p, b_p) in hidden:
        wb_args += [w_p, b_p]
        in_specs += [pl.BlockSpec(w_p.shape, lambda i: (0, 0)),
                     pl.BlockSpec(b_p.shape, lambda i: (0, 0))]
    wb_args += [out_w, out_b]
    in_specs += [pl.BlockSpec(out_w.shape, lambda i: (0, 0)),
                 pl.BlockSpec(out_b.shape, lambda i: (0, 0))]
    out_spec = pl.BlockSpec((TB, value_size), lambda i: (i, 0))

    # Advisory cost estimate.
    flops = 0
    for (w_p, _) in hidden:
        flops += 2 * B_pad * w_p.shape[0] * w_p.shape[1]
    if value_size == 1:
        flops += 2 * B_pad * out_w.shape[1]
    else:
        flops += 2 * B_pad * out_w.shape[0] * out_w.shape[1]
    bytes_accessed = (x.size * x.dtype.itemsize
                      + sum(a.size * a.dtype.itemsize for a in wb_args)
                      + B_pad * value_size * 4)

    # Only override the scoped-VMEM limit when the footprint might exceed the
    # most conservative default (v5e: 16 MiB); cap under v7x's 64 MiB physical.
    widths = [w.shape[1] for (w, _) in hidden] + [out_w.shape[1], state_size]
    vmem_est = (2 * TB * state_size * x.dtype.itemsize            # x (2 bufs)
                + 2 * TB * value_size * 4                         # out (2 bufs)
                + 2 * sum(a.size * a.dtype.itemsize for a in wb_args)
                + 4 * TB * max(widths) * 4)                       # live acts
    cp_kwargs = dict(dimension_semantics=("parallel",))
    if vmem_est > (12 << 20):
        cp_kwargs["vmem_limit_bytes"] = min(int(vmem_est * 2), 48 << 20)

    kernel = functools.partial(_mlp_kernel, num_hidden=num_hidden,
                               value_size=value_size)
    out = pl.pallas_call(
        kernel,
        out_shape=jax.ShapeDtypeStruct((B_pad, value_size), jnp.float32),
        grid=(n_tiles,),
        in_specs=in_specs,
        out_specs=out_spec,
        compiler_params=pltpu.CompilerParams(**cp_kwargs),
        cost_estimate=pl.CostEstimate(flops=flops, transcendentals=0,
                                      bytes_accessed=bytes_accessed),
    )(x, *wb_args)

    return out[:B]                                    # drop batch padding only


# ----------------------------------------------------------------------------
# Parameter initialization (deterministic, PyTorch-Linear-style uniform bounds)
# ----------------------------------------------------------------------------
def init_critic_params(key, state_size, value_size, hidden_layers):
    sizes = [state_size] + list(hidden_layers) + [value_size]
    params = []
    for din, dout in zip(sizes[:-1], sizes[1:]):
        key, kw, kb = jax.random.split(key, 3)
        bound = 1.0 / jnp.sqrt(jnp.float32(din))
        w_t = jax.random.uniform(kw, (din, dout), jnp.float32, -bound, bound)
        b = jax.random.uniform(kb, (dout,), jnp.float32, -bound, bound)
        params.append((w_t, b))
    return params


if __name__ == "__main__":
    # Small shapes consistent with the module's forward (2 grid tiles + batch pad).
    batch = 24
    state_size = 32
    hidden_layers = [64, 32]
    value_size = 1

    key = jax.random.PRNGKey(0)
    k_state, k_params = jax.random.split(key)

    state = jax.random.normal(k_state, (batch, state_size), jnp.float32)
    params = init_critic_params(k_params, state_size, value_size, hidden_layers)
    padded = pad_params(params)          # pad once, outside the forward path

    out = critic_ppo_forward(state, padded)
    out = jax.block_until_ready(out)

    assert out.shape == (batch, value_size), out.shape
    assert out.dtype == jnp.float32

    # Pure-JAX reference of the same math (unpadded).
    ref = state
    for (w_t, b) in params[:-1]:
        ref = jnp.maximum(ref @ w_t + b, 0.0)
    ref = ref @ params[-1][0] + params[-1][1]
    assert jnp.allclose(out, ref, atol=1e-5, rtol=1e-5)

    print("KERNEL_OK")
</pallas_src>

<mosaic_0001>
module attributes {stable_mosaic.version = 11 : i64} {
  func.func @_mlp_kernel(%arg0: i32, %arg1: memref<16x32xf32, #tpu.memory_space<vmem>>, %arg2: memref<32x128xf32, #tpu.memory_space<vmem>>, %arg3: memref<1x128xf32, #tpu.memory_space<vmem>>, %arg4: memref<128x128xf32, #tpu.memory_space<vmem>>, %arg5: memref<1x128xf32, #tpu.memory_space<vmem>>, %arg6: memref<1x128xf32, #tpu.memory_space<vmem>>, %arg7: memref<1x1xf32, #tpu.memory_space<vmem>>, %arg8: memref<16x1xf32, #tpu.memory_space<vmem>>) attributes {dimension_semantics = [#tpu.dimension_semantics<parallel>], iteration_bounds = array<i64: 2>, scalar_prefetch = 0 : i64, scratch_operands = 0 : i64, tpu.core_type = #tpu.core_type<tc>, window_params = [{transform_indices = @transform_0, window_bounds = array<i64: 16, 32>}, {pipeline_mode = #tpu.pipeline_mode<synchronous>, transform_indices = @transform_1, window_bounds = array<i64: 32, 128>}, {pipeline_mode = #tpu.pipeline_mode<synchronous>, transform_indices = @transform_2, window_bounds = array<i64: 1, 128>}, {pipeline_mode = #tpu.pipeline_mode<synchronous>, transform_indices = @transform_3, window_bounds = array<i64: 128, 128>}, {pipeline_mode = #tpu.pipeline_mode<synchronous>, transform_indices = @transform_4, window_bounds = array<i64: 1, 128>}, {pipeline_mode = #tpu.pipeline_mode<synchronous>, transform_indices = @transform_5, window_bounds = array<i64: 1, 128>}, {pipeline_mode = #tpu.pipeline_mode<synchronous>, transform_indices = @transform_6, window_bounds = array<i64: 1, 1>}, {transform_indices = @transform_7, window_bounds = array<i64: 16, 1>}]} {
    %c0 = arith.constant 0 : index
    %c0_0 = arith.constant 0 : index
    %0 = vector.load %arg1[%c0, %c0_0] : memref<16x32xf32, #tpu.memory_space<vmem>>, vector<16x32xf32>
    %c0_1 = arith.constant 0 : index
    %c0_2 = arith.constant 0 : index
    %1 = vector.load %arg2[%c0_1, %c0_2] : memref<32x128xf32, #tpu.memory_space<vmem>>, vector<32x128xf32>
    %cst = arith.constant dense<0.000000e+00> : vector<16x128xf32>
    %2 = tpu.matmul %0, %1, %cst {dimension_numbers = #tpu.dot_dimension_numbers<[1], [0], [0], [1], [0, 0, 1, 1], [], []>} : vector<16x32xf32>, vector<32x128xf32>, vector<16x128xf32> -> vector<16x128xf32>
    %c0_3 = arith.constant 0 : index
    %c0_4 = arith.constant 0 : index
    %3 = vector.load %arg3[%c0_3, %c0_4] : memref<1x128xf32, #tpu.memory_space<vmem>>, vector<1x128xf32>
    %4 = vector.broadcast %3 : vector<1x128xf32> to vector<16x128xf32>
    %5 = arith.addf %2, %4 : vector<16x128xf32>
    %cst_5 = arith.constant 0.000000e+00 : f32
    %6 = vector.broadcast %cst_5 : f32 to vector<16x128xf32>
    %7 = arith.maximumf %5, %6 : vector<16x128xf32>
    %c0_6 = arith.constant 0 : index
    %c0_7 = arith.constant 0 : index
    %8 = vector.load %arg4[%c0_6, %c0_7] : memref<128x128xf32, #tpu.memory_space<vmem>>, vector<128x128xf32>
    %cst_8 = arith.constant dense<0.000000e+00> : vector<16x128xf32>
    %9 = tpu.matmul %7, %8, %cst_8 {dimension_numbers = #tpu.dot_dimension_numbers<[1], [0], [0], [1], [0, 0, 1, 1], [], []>} : vector<16x128xf32>, vector<128x128xf32>, vector<16x128xf32> -> vector<16x128xf32>
    %c0_9 = arith.constant 0 : index
    %c0_10 = arith.constant 0 : index
    %10 = vector.load %arg5[%c0_9, %c0_10] : memref<1x128xf32, #tpu.memory_space<vmem>>, vector<1x128xf32>
    %11 = vector.broadcast %10 : vector<1x128xf32> to vector<16x128xf32>
    %12 = arith.addf %9, %11 : vector<16x128xf32>
    %cst_11 = arith.constant 0.000000e+00 : f32
    %13 = vector.broadcast %cst_11 : f32 to vector<16x128xf32>
    %14 = arith.maximumf %12, %13 : vector<16x128xf32>
    %c0_12 = arith.constant 0 : index
    %c0_13 = arith.constant 0 : index
    %15 = vector.load %arg6[%c0_12, %c0_13] : memref<1x128xf32, #tpu.memory_space<vmem>>, vector<1x128xf32>
    %16 = vector.broadcast %15 : vector<1x128xf32> to vector<16x128xf32>
    %17 = arith.mulf %14, %16 : vector<16x128xf32>
    %cst_14 = arith.constant dense<0.000000e+00> : vector<16xf32>
    %18 = vector.multi_reduction <add>, %17, %cst_14 [1] : vector<16x128xf32> to vector<16xf32>
    %19 = vector.shape_cast %18 : vector<16xf32> to vector<16x1xf32>
    %c0_15 = arith.constant 0 : index
    %c0_16 = arith.constant 0 : index
    %20 = vector.load %arg7[%c0_15, %c0_16] : memref<1x1xf32, #tpu.memory_space<vmem>>, vector<1x1xf32>
    %21 = vector.broadcast %20 : vector<1x1xf32> to vector<16x1xf32>
    %22 = arith.addf %19, %21 : vector<16x1xf32>
    %c0_17 = arith.constant 0 : index
    %c0_18 = arith.constant 0 : index
    %23 = vector.load %arg8[%c0_17, %c0_18] : memref<16x1xf32, #tpu.memory_space<vmem>>, vector<16x1xf32>
    tpu.vector_store %arg8[%c0_17, %c0_18], %22 {strides = array<i32>} : memref<16x1xf32, #tpu.memory_space<vmem>>, vector<16x1xf32>,
    return
  }
  func.func @transform_0(%arg0: i32) -> (i32, i32) {
    %c0_i32 = arith.constant 0 : i32
    %c0_i32_0 = arith.constant 0 : i32
    return %arg0, %c0_i32 : i32, i32
  }
  func.func @transform_1(%arg0: i32) -> (i32, i32) {
    %c0_i32 = arith.constant 0 : i32
    %c0_i32_0 = arith.constant 0 : i32
    %c0_i32_1 = arith.constant 0 : i32
    return %c0_i32, %c0_i32_0 : i32, i32
  }
  func.func @transform_2(%arg0: i32) -> (i32, i32) {
    %c0_i32 = arith.constant 0 : i32
    %c0_i32_0 = arith.constant 0 : i32
    %c0_i32_1 = arith.constant 0 : i32
    return %c0_i32, %c0_i32_0 : i32, i32
  }
  func.func @transform_3(%arg0: i32) -> (i32, i32) {
    %c0_i32 = arith.constant 0 : i32
    %c0_i32_0 = arith.constant 0 : i32
    %c0_i32_1 = arith.constant 0 : i32
    return %c0_i32, %c0_i32_0 : i32, i32
  }
  func.func @transform_4(%arg0: i32) -> (i32, i32) {
    %c0_i32 = arith.constant 0 : i32
    %c0_i32_0 = arith.constant 0 : i32
    %c0_i32_1 = arith.constant 0 : i32
    return %c0_i32, %c0_i32_0 : i32, i32
  }
  func.func @transform_5(%arg0: i32) -> (i32, i32) {
    %c0_i32 = arith.constant 0 : i32
    %c0_i32_0 = arith.constant 0 : i32
    %c0_i32_1 = arith.constant 0 : i32
    return %c0_i32, %c0_i32_0 : i32, i32
  }
  func.func @transform_6(%arg0: i32) -> (i32, i32) {
    %c0_i32 = arith.constant 0 : i32
    %c0_i32_0 = arith.constant 0 : i32
    %c0_i32_1 = arith.constant 0 : i32
    return %c0_i32, %c0_i32_0 : i32, i32
  }
  func.func @transform_7(%arg0: i32) -> (i32, i32) {
    %c0_i32 = arith.constant 0 : i32
    %c0_i32_0 = arith.constant 0 : i32
    return %arg0, %c0_i32 : i32, i32
  }
}

</mosaic_0001>

<llo_original>
// kernel: tpu_custom_call.1
$region0: #{tpu_custom_call.1}
  #allocation0 [shape = 'u32[]', space=smem, size = 0x4, offset = 0x4, fixed_abs, tag = 'smem constant byte address 0x4 - core index']
  #allocation1 [shape = 'u32[72,128]{1,0:T(1,128)}', space=vmem, size = 0x9000, scoped, tag = 'internal scratch']
  #allocation2 [shape = 'f32[1,1]{1,0:T(1,128)S(1)}', space=vmem, size = 0x200, scoped, tag = 'scoped memory for tpu_custom_call.1']
  %s0 = inlined_call_operand.hbm [shape: f32[32,32], index: 0, kind: input, shape index: {}]
  %s1 = inlined_call_operand.hbm [shape: f32[32,128], index: 1, kind: input, shape index: {}]
  %s2 = inlined_call_operand.vmem [shape: f32[1,128], index: 2, kind: input, shape index: {}]
  %s3 = inlined_call_operand.hbm [shape: f32[128,128], index: 3, kind: input, shape index: {}]
  %s4 = inlined_call_operand.vmem [shape: f32[1,128], index: 4, kind: input, shape index: {}]
  %s5 = inlined_call_operand.vmem [shape: f32[1,128], index: 5, kind: input, shape index: {}]
  %s6 = inlined_call_operand.<no memory space> [shape: f32[1,1], index: 6, kind: input, shape index: {}]
  %s7 = inlined_call_operand.vmem [shape: f32[32,1], index: 7, kind: output, shape index: {}]
  %s8 = sld [smem:[#allocation0]]
  $region73: #{tpu_custom_call.1} parent=0
    _
  %s10 = ssub.s32 1, %s8
  %s11 = scalar_select 0, %s10, %s8
  %v12 = vstv %s6
  %13 = vst [vmem:[#allocation2] sm:$0x1] %v12
  $region1: #{tpu_custom_call.1} parent=0
    #allocation3 [shape = 'u8[16384]{0}', space=vmem, size = 0x4000, scoped, tag = 'input window, operand 0']
    #allocation4 [shape = 's32[2]{0}', space=sflag, size = 0x8, scoped, tag = 'scoped memory for tpu_custom_call.1']
    #allocation5 [shape = 'u8[16384]{0}', space=vmem, size = 0x4000, scoped, tag = 'input window, operand 1, single buffered']
    #allocation6 [shape = 's32[1]{0}', space=sflag, size = 0x4, scoped, tag = 'scoped memory for tpu_custom_call.1']
    #allocation7 [shape = 'u8[65536]{0}', space=vmem, size = 0x10000, scoped, tag = 'input window, operand 3, single buffered']
    %14 = vsyncpa [#allocation4], 0
    %s15 = scalar_lea.sflag [#allocation4], 1
    %16 = vsyncpa %s15, 0
    %17 = vsyncpa [#allocation6], 0
    loop: start=0, step=1, limit=4
    $region2: #{tpu_custom_call.1} parent=1 // loop_pre_header
      _
    $region3: #{tpu_custom_call.1} parent=1 // loop_header
      %s19 = sphi 0, %s23
      %p20 = scmp.ge.s32.totalorder %s19, 4
      %s29 = sphi 0, %s31
      %s32 = sphi 0, %s29
      %s33 = sphi 0, %s32
      %s49 = sphi 0, %s33
      %s53 = sphi 0, %s53
      %s55 = sphi 0, %s53
      %s56 = sphi 0, %s55
      %s70 = sphi 0, %s56
      %s74 = sphi 0, %s74
      %s76 = sphi 0, %s74
      %s77 = sphi 0, %s76
      %s91 = sphi 0, %s77
      %s95 = sphi 0, %s95
      %s97 = sphi 0, %s95
      %s98 = sphi 0, %s97
      %s112 = sphi 0, %s98
      %s116 = sphi 0, %s116
      %s118 = sphi 0, %s116
      %s119 = sphi 0, %s118
      %s133 = sphi 0, %s119
      %s137 = sphi 0, %s137
      %s139 = sphi 0, %s137
      %s140 = sphi 0, %s139
      %s154 = sphi 0, %s140
      %s158 = sphi 0, %s158
      %s160 = sphi 0, %s158
      %s161 = sphi 0, %s160
      %s175 = sphi 0, %s161
      %s181 = sphi 0, %s183
      %s184 = sphi 0, %s181
      %s185 = sphi 0, %s184
      %s201 = sphi 0, %s185
    $region4: #{tpu_custom_call.1} parent=1 // loop_header_branch
      %22 = sbr.rel (%p20) target = $region8
    $region5: #{tpu_custom_call.1} parent=1 // loop_body
      %s24 = ssub.s32 %s19, 1
      %s25 = ssub.s32 %s19, 2
      %s26 = sadd.s32 %s19, 1
      %s27 = ssub.s32 %s19, %s26
      %p28 = scmp.eq.s32.totalorder %s27, 0
      %s30 = sadd.s32 %s29, 1
      %s31 = scalar_select %p28, %s29, %s30
      %p34 = pneg %p28
      %p35 = scmp.eq.s32.totalorder %s19, 1
      %p36 = por %p34, %p35
      %p37 = scmp.ne.s32.totalorder %s29, %s32
      %p38 = scmp.eq.s32.totalorder %s19, 0
      %p39 = por %p37, %p38
      %p40 = scmp.ne.s32.totalorder %s29, %s32
      %p41 = scmp.eq.s32.totalorder %s24, 1
      %p42 = por %p40, %p41
      %p43 = scmp.ne.s32.totalorder %s32, %s33
      %p44 = scmp.eq.s32.totalorder %s24, 0
      %p45 = por %p43, %p44
      %p46 = scmp.ne.s32.totalorder %s32, %s33
      %p47 = scmp.eq.s32.totalorder %s25, 1
      %p48 = por %p46, %p47
      %p50 = scmp.ne.s32.totalorder %s33, %s49
      %p51 = scmp.eq.s32.totalorder %s25, 0
      %p52 = por %p50, %p51
      %s54 = sadd.s32 %s53, 1
      %p57 = scmp.eq.s32.totalorder %s19, 1
      %p58 = scmp.ne.s32.totalorder %s53, %s55
      %p59 = scmp.eq.s32.totalorder %s19, 0
      %p60 = por %p58, %p59
      %p61 = scmp.ne.s32.totalorder %s53, %s55
      %p62 = scmp.eq.s32.totalorder %s24, 1
      %p63 = por %p61, %p62
      %p64 = scmp.ne.s32.totalorder %s55, %s56
      %p65 = scmp.eq.s32.totalorder %s24, 0
      %p66 = por %p64, %p65
      %p67 = scmp.ne.s32.totalorder %s55, %s56
      %p68 = scmp.eq.s32.totalorder %s25, 1
      %p69 = por %p67, %p68
      %p71 = scmp.ne.s32.totalorder %s56, %s70
      %p72 = scmp.eq.s32.totalorder %s25, 0
      %p73 = por %p71, %p72
      %s75 = sadd.s32 %s74, 1
      %p78 = scmp.eq.s32.totalorder %s19, 1
      %p79 = scmp.ne.s32.totalorder %s74, %s76
      %p80 = scmp.eq.s32.totalorder %s19, 0
      %p81 = por %p79, %p80
      %p82 = scmp.ne.s32.totalorder %s74, %s76
      %p83 = scmp.eq.s32.totalorder %s24, 1
      %p84 = por %p82, %p83
      %p85 = scmp.ne.s32.totalorder %s76, %s77
      %p86 = scmp.eq.s32.totalorder %s24, 0
      %p87 = por %p85, %p86
      %p88 = scmp.ne.s32.totalorder %s76, %s77
      %p89 = scmp.eq.s32.totalorder %s25, 1
      %p90 = por %p88, %p89
      %p92 = scmp.ne.s32.totalorder %s77, %s91
      %p93 = scmp.eq.s32.totalorder %s25, 0
      %p94 = por %p92, %p93
      %s96 = sadd.s32 %s95, 1
      %p99 = scmp.eq.s32.totalorder %s19, 1
      %p100 = scmp.ne.s32.totalorder %s95, %s97
      %p101 = scmp.eq.s32.totalorder %s19, 0
      %p102 = por %p100, %p101
      %p103 = scmp.ne.s32.totalorder %s95, %s97
      %p104 = scmp.eq.s32.totalorder %s24, 1
      %p105 = por %p103, %p104
      %p106 = scmp.ne.s32.totalorder %s97, %s98
      %p107 = scmp.eq.s32.totalorder %s24, 0
      %p108 = por %p106, %p107
      %p109 = scmp.ne.s32.totalorder %s97, %s98
      %p110 = scmp.eq.s32.totalorder %s25, 1
      %p111 = por %p109, %p110
      %p113 = scmp.ne.s32.totalorder %s98, %s112
      %p114 = scmp.eq.s32.totalorder %s25, 0
      %p115 = por %p113, %p114
      %s117 = sadd.s32 %s116, 1
      %p120 = scmp.eq.s32.totalorder %s19, 1
      %p121 = scmp.ne.s32.totalorder %s116, %s118
      %p122 = scmp.eq.s32.totalorder %s19, 0
      %p123 = por %p121, %p122
      %p124 = scmp.ne.s32.totalorder %s116, %s118
      %p125 = scmp.eq.s32.totalorder %s24, 1
      %p126 = por %p124, %p125
      %p127 = scmp.ne.s32.totalorder %s118, %s119
      %p128 = scmp.eq.s32.totalorder %s24, 0
      %p129 = por %p127, %p128
      %p130 = scmp.ne.s32.totalorder %s118, %s119
      %p131 = scmp.eq.s32.totalorder %s25, 1
      %p132 = por %p130, %p131
      %p134 = scmp.ne.s32.totalorder %s119, %s133
      %p135 = scmp.eq.s32.totalorder %s25, 0
      %p136 = por %p134, %p135
      %s138 = sadd.s32 %s137, 1
      %p141 = scmp.eq.s32.totalorder %s19, 1
      %p142 = scmp.ne.s32.totalorder %s137, %s139
      %p143 = scmp.eq.s32.totalorder %s19, 0
      %p144 = por %p142, %p143
      %p145 = scmp.ne.s32.totalorder %s137, %s139
      %p146 = scmp.eq.s32.totalorder %s24, 1
      %p147 = por %p145, %p146
      %p148 = scmp.ne.s32.totalorder %s139, %s140
      %p149 = scmp.eq.s32.totalorder %s24, 0
      %p150 = por %p148, %p149
      %p151 = scmp.ne.s32.totalorder %s139, %s140
      %p152 = scmp.eq.s32.totalorder %s25, 1
      %p153 = por %p151, %p152
      %p155 = scmp.ne.s32.totalorder %s140, %s154
      %p156 = scmp.eq.s32.totalorder %s25, 0
      %p157 = por %p155, %p156
      %s159 = sadd.s32 %s158, 1
      %p162 = scmp.eq.s32.totalorder %s19, 1
      %p163 = scmp.ne.s32.totalorder %s158, %s160
      %p164 = scmp.eq.s32.totalorder %s19, 0
      %p165 = por %p163, %p164
      %p166 = scmp.ne.s32.totalorder %s158, %s160
      %p167 = scmp.eq.s32.totalorder %s24, 1
      %p168 = por %p166, %p167
      %p169 = scmp.ne.s32.totalorder %s160, %s161
      %p170 = scmp.eq.s32.totalorder %s24, 0
      %p171 = por %p169, %p170
      %p172 = scmp.ne.s32.totalorder %s160, %s161
      %p173 = scmp.eq.s32.totalorder %s25, 1
      %p174 = por %p172, %p173
      %p176 = scmp.ne.s32.totalorder %s161, %s175
      %p177 = scmp.eq.s32.totalorder %s25, 0
      %p178 = por %p176, %p177
      %s179 = ssub.s32 %s19, %s26
      %p180 = scmp.eq.s32.totalorder %s179, 0
      %s182 = sadd.s32 %s181, 1
      %s183 = scalar_select %p180, %s181, %s182
      %p186 = pneg %p180
      %p187 = scmp.eq.s32.totalorder %s19, 1
      %p188 = por %p186, %p187
      %p189 = scmp.ne.s32.totalorder %s181, %s184
      %p190 = scmp.eq.s32.totalorder %s19, 0
      %p191 = por %p189, %p190
      %p192 = scmp.ne.s32.totalorder %s181, %s184
      %p193 = scmp.eq.s32.totalorder %s24, 1
      %p194 = por %p192, %p193
      %p195 = scmp.ne.s32.totalorder %s184, %s185
      %p196 = scmp.eq.s32.totalorder %s24, 0
      %p197 = por %p195, %p196
      %p198 = scmp.ne.s32.totalorder %s184, %s185
      %p199 = scmp.eq.s32.totalorder %s25, 1
      %p200 = por %p198, %p199
      %p202 = scmp.ne.s32.totalorder %s185, %s201
      %p203 = scmp.eq.s32.totalorder %s25, 0
      %p204 = por %p202, %p203
      %p205 = scmp.le.s32.totalorder 1, %s19
      %p206 = scmp.lt.s32.totalorder %s19, 3
      %p207 = pnand %p205, %p206
      %p208 = pneg %p207
      // Predicated region
      $region9: #{tpu_custom_call.1} parent=5 // pred_check
        _
      $region10: #{tpu_custom_call.1} parent=5 // pred_check_branch
        %210 = sbr.rel (%p207) target = $region12
      $region11: #{tpu_custom_call.1} parent=5 // pred_region
        %s211 = ssub.s32 %s19, 1
        // Predicated region
        $region13: #{tpu_custom_call.1} parent=11 // pred_check
          %p212 = pneg %p66
        $region14: #{tpu_custom_call.1} parent=11 // pred_check_branch
          %214 = sbr.rel (%p212) target = $region16
        $region15: #{tpu_custom_call.1} parent=11 // pred_region
          %216 = vsyncadd [#allocation6], 0
          %s217 = sshll.u32 %s1, 4
          %s218 = int_to_ptr.hbm [resolvable:$true] %s217
          %s219 = sshll.u32 [#allocation5], 4
          %s220 = int_to_ptr.vmem [resolvable:$true] %s219
          %225 = dma.hbm_to_vmem [thread:$0]  %s218, 512, %s220, [#allocation6], 128, 128, 8
        $region16: #{tpu_custom_call.1} parent=11 // pred_fallthru
          _
        // Predicated region
        $region17: #{tpu_custom_call.1} parent=11 // pred_check
          %p226 = pneg %p87
        $region18: #{tpu_custom_call.1} parent=11 // pred_check_branch
          %228 = sbr.rel (%p226) target = $region20
        $region19: #{tpu_custom_call.1} parent=11 // pred_region
          _
        $region20: #{tpu_custom_call.1} parent=11 // pred_fallthru
          _
        // Predicated region
        $region21: #{tpu_custom_call.1} parent=11 // pred_check
          %p229 = pneg %p108
        $region22: #{tpu_custom_call.1} parent=11 // pred_check_branch
          %231 = sbr.rel (%p229) target = $region24
        $region23: #{tpu_custom_call.1} parent=11 // pred_region
          %233 = vsyncadd [#allocation6], 0
          %s234 = sshll.u32 %s3, 4
          %s235 = int_to_ptr.hbm [resolvable:$true] %s234
          %s236 = sshll.u32 [#allocation7], 4
          %s237 = int_to_ptr.vmem [resolvable:$true] %s236
          %242 = dma.hbm_to_vmem [thread:$0]  %s235, 2048, %s237, [#allocation6], 128, 128, 8
        $region24: #{tpu_custom_call.1} parent=11 // pred_fallthru
          _
        // Predicated region
        $region25: #{tpu_custom_call.1} parent=11 // pred_check
          %p243 = pneg %p129
        $region26: #{tpu_custom_call.1} parent=11 // pred_check_branch
          %245 = sbr.rel (%p243) target = $region28
        $region27: #{tpu_custom_call.1} parent=11 // pred_region
          _
        $region28: #{tpu_custom_call.1} parent=11 // pred_fallthru
          _
        // Predicated region
        $region29: #{tpu_custom_call.1} parent=11 // pred_check
          %p246 = pneg %p150
        $region30: #{tpu_custom_call.1} parent=11 // pred_check_branch
          %248 = sbr.rel (%p246) target = $region32
        $region31: #{tpu_custom_call.1} parent=11 // pred_region
          _
        $region32: #{tpu_custom_call.1} parent=11 // pred_fallthru
          _
        // Predicated region
        $region33: #{tpu_custom_call.1} parent=11 // pred_check
          %p249 = pneg %p171
        $region34: #{tpu_custom_call.1} parent=11 // pred_check_branch
          %251 = sbr.rel (%p249) target = $region36
        $region35: #{tpu_custom_call.1} parent=11 // pred_region
          _
        $region36: #{tpu_custom_call.1} parent=11 // pred_fallthru
          _
      $region12: #{tpu_custom_call.1} parent=5 // pred_fallthru
        _
      %p252 = scmp.lt.s32.totalorder %s19, 2
      // Predicated region
      $region37: #{tpu_custom_call.1} parent=5 // pred_check
        %p253 = pneg %p252
      $region38: #{tpu_custom_call.1} parent=5 // pred_check_branch
        %255 = sbr.rel (%p253) target = $region40
      $region39: #{tpu_custom_call.1} parent=5 // pred_region
        // Predicated region
        $region41: #{tpu_custom_call.1} parent=39 // pred_check
          %p256 = pneg %p39
        $region42: #{tpu_custom_call.1} parent=39 // pred_check_branch
          %258 = sbr.rel (%p256) target = $region44
        $region43: #{tpu_custom_call.1} parent=39 // pred_region
          %s259 = sand.u32 %s29, 1
          %s260 = scalar_lea.sflag [#allocation4], %s259
          %s261 = sand.u32 %s29, 1
          %s262 = smul.addr %s261, 16
          %s263 = scalar_lea.vmem [#allocation3], %s262
          %s264 = smul.u32 2, %s19
          %266 = vsyncadd %s260, 0
          %s267 = smul.addr %s264, 8
          %s268 = scalar_lea.hbm %s0, %s267
          %s269 = sshll.u32 %s268, 4
          %s270 = int_to_ptr.hbm [resolvable:$true] %s269
          %s271 = sshll.u32 %s263, 4
          %s272 = int_to_ptr.vmem [resolvable:$true] %s271
          %277 = dma.hbm_to_vmem [thread:$0]  %s270, 256, %s272, %s260, 128, 128, 8
        $region44: #{tpu_custom_call.1} parent=39 // pred_fallthru
          _
      $region40: #{tpu_custom_call.1} parent=5 // pred_fallthru
        _
      %p278 = scmp.le.s32.totalorder 1, %s19
      %p279 = scmp.lt.s32.totalorder %s19, 3
      %p280 = pnand %p278, %p279
      %p281 = pneg %p280
      // Predicated region
      $region45: #{tpu_custom_call.1} parent=5 // pred_check
        _
      $region46: #{tpu_custom_call.1} parent=5 // pred_check_branch
        %283 = sbr.rel (%p280) target = $region48
      $region47: #{tpu_custom_call.1} parent=5 // pred_region
        %s284 = ssub.s32 %s19, 1
        %s285 = sand.u32 %s32, 1
        %s286 = scalar_lea.sflag [#allocation4], %s285
        %s287 = sand.u32 %s32, 1
        %s288 = smul.addr %s287, 16
        %s289 = scalar_lea.vmem [#allocation3], %s288
        // Predicated region
        $region49: #{tpu_custom_call.1} parent=47 // pred_check
          %p290 = pneg %p45
        $region50: #{tpu_custom_call.1} parent=47 // pred_check_branch
          %292 = sbr.rel (%p290) target = $region52
        $region51: #{tpu_custom_call.1} parent=47 // pred_region
          %294 = dma.done %s286, 256
        $region52: #{tpu_custom_call.1} parent=47 // pred_fallthru
          _
        // Predicated region
        $region53: #{tpu_custom_call.1} parent=47 // pred_check
          %p295 = pneg %p66
        $region54: #{tpu_custom_call.1} parent=47 // pred_check_branch
          %297 = sbr.rel (%p295) target = $region56
        $region55: #{tpu_custom_call.1} parent=47 // pred_region
          %299 = dma.done [#allocation6], 512
        $region56: #{tpu_custom_call.1} parent=47 // pred_fallthru
          _
        // Predicated region
        $region57: #{tpu_custom_call.1} parent=47 // pred_check
          %p300 = pneg %p108
        $region58: #{tpu_custom_call.1} parent=47 // pred_check_branch
          %302 = sbr.rel (%p300) target = $region60
        $region59: #{tpu_custom_call.1} parent=47 // pred_region
          %304 = dma.done [#allocation6], 2048
        $region60: #{tpu_custom_call.1} parent=47 // pred_fallthru
          _
        %s305 = sand.u32 %s32, 1
        %s306 = scalar_lea.sflag [#allocation4], %s305
        %s307 = sand.u32 %s32, 1
        %s308 = smul.addr %s307, 16
        %s309 = scalar_lea.vmem [#allocation3], %s308
        %p310 = pneg %p45
        %p311 = pneg %p42
        %p312 = pneg %p66
        %p313 = pneg %p63
        %p314 = pneg %p87
        %p315 = pneg %p84
        %p316 = pneg %p108
        %p317 = pneg %p105
        %p318 = pneg %p129
        %p319 = pneg %p126
        %p320 = pneg %p150
        %p321 = pneg %p147
        %p322 = pneg %p171
        %p323 = pneg %p168
        %p324 = pneg %p197
        %p325 = pneg %p194
        %s326 = smul.u32 2, %s24
        %p327 = scmp.lt.s32.totalorder %s326, 3
        %s328 = scalar_select %p327, %s326, 3
        %s329 = smul.addr %s328, 8
        %s330 = scalar_lea.vmem %s7, %s329
        %s331 = smul.u32 2, %s24
        %s332 = smul.u32 2, %s24
        %p333 = scmp.lt.s32.totalorder %s332, 3
        %s334 = scalar_select %p333, %s332, 3
        %s335 = smul.addr %s334, 8
        %s336 = scalar_lea.vmem %s7, %s335
        %s337 = smul.u32 2, %s24
        %v338 = vld [vmem:[%s289] sm:$0xff]
        %v339 = vld [vmem:[%s289 + $0x8] sm:$0xff]
        %v340 = vld [vmem:[#allocation5] sm:$0xff]
        %v341 = vld [vmem:[#allocation5 + $0x8] sm:$0xff]
        %v342 = vld [vmem:[#allocation5 + $0x10] sm:$0xff]
        %v343 = vld [vmem:[#allocation5 + $0x18] sm:$0xff]
        %v344 = vld [vmem:[%s2] sm:$0x1]
        %v346 = vperm.slane %v344, 0
        %vm348 = vcmask 261120
        %v350 = vsel %vm348, %v338, 0
        %v353 = vsel %vm348, %v339, 0
        %355 = vmatpush.msra.mxu0 0.0
        %356 = vmatpush.msra.mxu0 0.0
        %357 = vmatpush.msra.mxu0 0.0
        %358 = vmatpush.msra.mxu0 0.0
        %359 = vmatpush.msra.mxu0 0.0
        %360 = vmatpush.msra.mxu0 0.0
        %361 = vmatpush.msra.mxu0 0.0
        %362 = vmatpush.msra.mxu0 0.0
        %363 = vmatpush.msra.mxu0 0.0
        %364 = vmatpush.msra.mxu0 0.0
        %365 = vmatpush.msra.mxu0 0.0
        %366 = vmatpush.msra.mxu0 0.0
        %367 = vmatpush.msra.mxu0 %v343
        %368 = vmatpush.msra.mxu0 %v342
        %369 = vmatpush.msra.mxu0 %v341
        %370 = vmatpush.msra.mxu0 %v340
        %371 = vmatmul.f32.gmra.mxu0 %v350
        %v372 = vpop.f32.mrf.mxu0
        %v373 = vadd.f32 %v346, %v372
        %374 = vmatmul.f32.gmra.mxu0 %v353
        %v375 = vpop.f32.mrf.mxu0
        %v376 = vadd.f32 %v346, %v375
        %377 = vdwg.mxu0
        %v378 = vmax.f32 %v373, 0.0
        %v379 = vmax.f32 %v376, 0.0
        %v380 = vld [vmem:[#allocation7] sm:$0xff]
        %v381 = vld [vmem:[#allocation7 + $0x8] sm:$0xff]
        %v382 = vld [vmem:[#allocation7 + $0x10] sm:$0xff]
        %v383 = vld [vmem:[#allocation7 + $0x18] sm:$0xff]
        %v384 = vld [vmem:[#allocation7 + $0x20] sm:$0xff]
        %v385 = vld [vmem:[#allocation7 + $0x28] sm:$0xff]
        %v386 = vld [vmem:[#allocation7 + $0x30] sm:$0xff]
        %v387 = vld [vmem:[#allocation7 + $0x38] sm:$0xff]
        %v388 = vld [vmem:[#allocation7 + $0x40] sm:$0xff]
        %v389 = vld [vmem:[#allocation7 + $0x48] sm:$0xff]
        %v390 = vld [vmem:[#allocation7 + $0x50] sm:$0xff]
        %v391 = vld [vmem:[#allocation7 + $0x58] sm:$0xff]
        %v392 = vld [vmem:[#allocation7 + $0x60] sm:$0xff]
        %v393 = vld [vmem:[#allocation7 + $0x68] sm:$0xff]
        %v394 = vld [vmem:[#allocation7 + $0x70] sm:$0xff]
        %v395 = vld [vmem:[#allocation7 + $0x78] sm:$0xff]
        %v396 = vld [vmem:[%s4] sm:$0x1]
        %v398 = vperm.slane %v396, 0
        %400 = vmatpush.msra.mxu0 %v395
        %401 = vmatpush.msra.mxu0 %v394
        %402 = vmatpush.msra.mxu0 %v393
        %403 = vmatpush.msra.mxu0 %v392
        %404 = vmatpush.msra.mxu0 %v391
        %405 = vmatpush.msra.mxu0 %v390
        %406 = vmatpush.msra.mxu0 %v389
        %407 = vmatpush.msra.mxu0 %v388
        %408 = vmatpush.msra.mxu0 %v387
        %409 = vmatpush.msra.mxu0 %v386
        %410 = vmatpush.msra.mxu0 %v385
        %411 = vmatpush.msra.mxu0 %v384
        %412 = vmatpush.msra.mxu0 %v383
        %413 = vmatpush.msra.mxu0 %v382
        %414 = vmatpush.msra.mxu0 %v381
        %415 = vmatpush.msra.mxu0 %v380
        %416 = vmatmul.f32.gmra.mxu0 %v378
        %v417 = vpop.f32.mrf.mxu0
        %v418 = vadd.f32 %v398, %v417
        %419 = vmatmul.f32.gmra.mxu0 %v379
        %v420 = vpop.f32.mrf.mxu0
        %v421 = vadd.f32 %v398, %v420
        %422 = vdwg.mxu0
        %v423 = vmax.f32 %v418, 0.0
        %v424 = vmax.f32 %v421, 0.0
        %v425 = vld [vmem:[%s5] sm:$0x1]
        %v427 = vperm.slane %v425, 0
        %v429 = vmul.f32 %v423, %v427
        %v430 = vmul.f32 %v424, %v427
        %431 = vadd.xlane.f32.xlu0 %v429
        %v432 = vpop.xlane.xlu0 %431
        %433 = vadd.xlane.f32.xlu0 %v430
        %v434 = vpop.xlane.xlu0 %433
        %v435 = vld [vmem:[#allocation2] sm:$0x1]
        %v437 = vperm.slane %v435, 0
        %v439 = vadd.f32 %v432, %v437
        %v440 = vadd.f32 %v434, %v437
        %vm441 = vcmask 7168
        %442 = vst.msk [vmem:[%s336] sm:$0xff] %vm441, %v439
        %443 = vst.msk [vmem:[%s336 + $0x8] sm:$0xff] %vm441, %v440
        %s444 = smul.u32 2, %s24
        %p445 = scmp.lt.s32.totalorder %s444, 3
        %s446 = scalar_select %p445, %s444, 3
        %s447 = smul.addr %s446, 8
        %s448 = scalar_lea.vmem %s7, %s447
        // Predicated region
        $region61: #{tpu_custom_call.1} parent=47 // pred_check
          %p449 = pneg %p194
        $region62: #{tpu_custom_call.1} parent=47 // pred_check_branch
          %451 = sbr.rel (%p449) target = $region64
        $region63: #{tpu_custom_call.1} parent=47 // pred_region
          %s452 = smul.u32 2, %s24
        $region64: #{tpu_custom_call.1} parent=47 // pred_fallthru
          _
      $region48: #{tpu_custom_call.1} parent=5 // pred_fallthru
        _
      %p453 = scmp.le.s32.totalorder 2, %s19
      // Predicated region
      $region65: #{tpu_custom_call.1} parent=5 // pred_check
        %p454 = pneg %p453
      $region66: #{tpu_custom_call.1} parent=5 // pred_check_branch
        %456 = sbr.rel (%p454) target = $region68
      $region67: #{tpu_custom_call.1} parent=5 // pred_region
        %s457 = ssub.s32 %s19, 2
        // Predicated region
        $region69: #{tpu_custom_call.1} parent=67 // pred_check
          %p458 = pneg %p200
        $region70: #{tpu_custom_call.1} parent=67 // pred_check_branch
          %460 = sbr.rel (%p458) target = $region72
        $region71: #{tpu_custom_call.1} parent=67 // pred_region
          %s461 = smul.u32 2, %s25
          %p462 = scmp.lt.s32.totalorder %s461, 3
          %s463 = scalar_select %p462, %s461, 3
          %s464 = smul.addr %s463, 8
          %s465 = scalar_lea.vmem %s7, %s464
        $region72: #{tpu_custom_call.1} parent=67 // pred_fallthru
          _
      $region68: #{tpu_custom_call.1} parent=5 // pred_fallthru
        _
    $region6: #{tpu_custom_call.1} parent=1 // loop_footer
      %s23 = sadd.s32 1, %s19
    $region7: #{tpu_custom_call.1} parent=1 // loop_footer_branch
      %18 = sbr.rel target = $region3
    $region8: #{tpu_custom_call.1} parent=1 // loop_exit
      _
    %466 = vsyncpa [#allocation4], 1
    %s467 = scalar_lea.sflag [#allocation4], 1
    %468 = vsyncpa %s467, 1
    %469 = vsyncpa [#allocation6], 1

</llo_original>
